<compile_context>
chip_gen: v5e
topology: v5e:2x2
jax: 0.10.0
libtpu: 0.0.40
codegen_flags: <defaults>
</compile_context>

<pallas_src>
import functools
import math

import jax
import jax.numpy as jnp
from jax.experimental import pallas as pl
from jax.experimental.pallas import tpu as pltpu

KEY_OUTPUT = "metric_depth"


def extract_key(prediction, key):
    if isinstance(prediction, dict):
        return prediction[key]
    return prediction


def _cdiv(a, b):
    return (a + b - 1) // b


def _round_up(x, m):
    return _cdiv(x, m) * m


def _vmem_capacity_bytes():
    """Physical VMEM of the attached TPU (generation aware tiling); conservative fallback."""
    try:
        return int(pltpu.get_tpu_info().vmem_capacity_bytes)
    except Exception:
        return 64 * 1024 * 1024   # v7x-sized fallback (safe everywhere)


def _bilinear_align_corners(x, out_hw):
    """Plain-JAX glue: NCHW bilinear resize with align_corners=True (matches F.interpolate).

    Computes in f32 but returns the INPUT dtype, so bf16 logits stay bf16 on the wire
    (keeps the kernel's dominant HBM read at half width).
    """
    N, C, H, W = x.shape
    Ho, Wo = out_hw
    xf = x.astype(jnp.float32)

    def coords(n_in, n_out):
        if n_out == 1:
            return jnp.zeros((1,), jnp.float32)
        return jnp.arange(n_out, dtype=jnp.float32) * (n_in - 1) / (n_out - 1)

    ys = coords(H, Ho)
    xs = coords(W, Wo)
    y0 = jnp.floor(ys).astype(jnp.int32)
    y1 = jnp.minimum(y0 + 1, H - 1)
    wy = (ys - y0.astype(jnp.float32))[None, None, :, None]
    x0 = jnp.floor(xs).astype(jnp.int32)
    x1 = jnp.minimum(x0 + 1, W - 1)
    wx = (xs - x0.astype(jnp.float32))[None, None, None, :]

    top = xf[:, :, y0, :]
    bot = xf[:, :, y1, :]
    v = top * (1.0 - wy) + bot * wy
    left = v[:, :, :, x0]
    right = v[:, :, :, x1]
    out = left * (1.0 - wx) + right * wx
    return out.astype(x.dtype)


def _ce_kernel(x_ref, d_ref, out_ref, *, alpha, inv_log_beta, bins, hw, tile,
               tiles_per_split, num_tiles, check_tail):
    """One (split, image, pixel-tile) grid step.

    x_ref  : (1, C, TILE)    logits in native dtype; classes on sublanes, pixels on lanes
    d_ref  : (1, 1, TILE)    f32 depth; masked / padded pixels carry depth 0 -> ignored
    out_ref: (1, 1, 2, TILE) resident accumulator; row 0 = loss partials, row 1 = valid counts
    """
    s = pl.program_id(0)
    t = pl.program_id(2)

    @pl.when(t == 0)
    def _init():
        out_ref[...] = jnp.zeros_like(out_ref)

    # Skip the (at most one per split) overhang tile that has no real work.
    @pl.when(s * tiles_per_split + t < num_tiles)
    def _compute():
        x = x_ref[0]                                   # (C, TILE), native dtype (bf16 OK)
        d = d_ref[0]                                   # (1, TILE), f32

        # quantize_depth: round(log(d/alpha) / log(beta/alpha) * (bins-1))
        tq = jnp.round(jnp.log(d * (1.0 / alpha)) * (inv_log_beta * float(bins - 1)))

        # validity: quantized bin in [0, bins-1]. Masked / padded / non-positive depths produce
        # NaN or -inf and fail the comparisons (pure selects, never a NaN*0 blend).
        valid = (tq >= 0.0) & (tq <= float(bins - 1))
        if check_tail:
            # The last real tile overhangs the (128-padded) pixel axis: its tail lanes hold
            # unspecified data, so gate them explicitly. Elided when tiles divide the axis.
            pos = (s * tiles_per_split + t) * tile + jax.lax.broadcasted_iota(
                jnp.int32, (1, tile), 1)
            valid = valid & (pos < hw)

        tq_i = jnp.where(valid, tq, 0.0).astype(jnp.int32)    # safe int cast (no NaN -> int)

        # Single max pass over the native-dtype tile (exact).
        mmax = jnp.max(x, axis=0, keepdims=True)               # (1, TILE)
        mmax_f = mmax.astype(jnp.float32)

        # exp pass: widen-on-read to f32 (no stored f32 copy of the whole tile), f32 class-sum.
        # TODO(synk): if profiling shows the EUP binding on v7x, run the exp in bf16 and keep
        # the class-sum and the log in f32.
        e_sum = jnp.sum(jnp.exp(x.astype(jnp.float32) - mmax_f), axis=0, keepdims=True)

        # One-hot gather of the target-class logit from the native-dtype tile
        # (exact: a single nonzero addend per lane).
        cls = jax.lax.broadcasted_iota(jnp.int32, x.shape, 0)  # (C, TILE)
        picked = jnp.sum(jnp.where(cls == tq_i, x, jnp.zeros((), x.dtype)),
                         axis=0, keepdims=True).astype(jnp.float32)

        # CE = lse - x[tq] = log(sum exp(x - max)) - (x[tq] - max)
        pix_loss = jnp.where(valid, jnp.log(e_sum) - (picked - mmax_f), 0.0)

        # Two row-sliced VPU adds into the live rows (no sublane concat / full-block RMW).
        out_ref[0, 0, 0:1, :] = out_ref[0, 0, 0:1, :] + pix_loss
        out_ref[0, 0, 1:2, :] = out_ref[0, 0, 1:2, :] + valid.astype(jnp.float32)


def _ce_loss_pallas(logits, depth, *, alpha, inv_log_beta, bins, hw, tile,
                    splits, tiles_per_split, num_tiles, vmem_limit_bytes):
    """Returns per-(image, split) partials of shape (N, splits, 2, tile):
    [..., 0, :] = loss sums, [..., 1, :] = valid-pixel counts."""
    N, C, HWp = logits.shape
    check_tail = (num_tiles * tile != HWp)
    last_block = num_tiles - 1

    kernel = functools.partial(
        _ce_kernel,
        alpha=float(alpha),
        inv_log_beta=float(inv_log_beta),
        bins=int(bins),
        hw=int(hw),
        tile=int(tile),
        tiles_per_split=int(tiles_per_split),
        num_tiles=int(num_tiles),
        check_tail=bool(check_tail),
    )

    def pix_map(s, n, t):
        # Clamp: a split's overhang tile re-reads the last real block; the kernel skips its
        # accumulate, so nothing is double counted and no out-of-range block is requested.
        return (n, 0, jnp.minimum(s * tiles_per_split + t, last_block))

    return pl.pallas_call(
        kernel,
        out_shape=jax.ShapeDtypeStruct((N, splits, 2, tile), jnp.float32),
        grid_spec=pltpu.PrefetchScalarGridSpec(
            num_scalar_prefetch=0,
            grid=(splits, N, tiles_per_split),
            in_specs=[
                pl.BlockSpec((1, C, tile), pix_map),
                pl.BlockSpec((1, 1, tile), pix_map),
            ],
            out_specs=pl.BlockSpec((1, 1, 2, tile), lambda s, n, t: (n, s, 0, 0)),
        ),
        compiler_params=pltpu.CompilerParams(
            # split & batch axes are parallel (feed both TensorCores on v7x, even at N=1);
            # the pixel-tile axis is the reduction -> arbitrary.
            dimension_semantics=("parallel", "parallel", "arbitrary"),
            vmem_limit_bytes=int(vmem_limit_bytes),
        ),
    )(logits, depth)


class DiscreteNLLLoss:
    """JAX/Pallas port of zoedepth DiscreteNLLLoss (cross-entropy over quantized depth bins)."""

    def __init__(self, min_depth=0.001, max_depth=10, depth_bins=64):
        self.name = "CrossEntropy"
        self.ignore_index = -(depth_bins + 1)
        self.min_depth = min_depth
        self.max_depth = max_depth
        self.depth_bins = depth_bins
        self.alpha = 1
        self.zeta = 1 - min_depth
        self.beta = max_depth + self.zeta

    def __call__(self, input, target, mask=None, interpolate=True,
                 return_interpolated=False, tile_hw=None):
        input = extract_key(input, KEY_OUTPUT)
        if input.shape[-1] != target.shape[-1] and interpolate:
            input = _bilinear_align_corners(input, target.shape[-2:])
        intr_input = input

        if target.ndim == 3:
            target = target[:, None]                   # N1HW
        if mask is not None and mask.ndim == 3:
            mask = mask[:, None]

        N, C, H, W = input.shape
        HW = H * W

        # NCHW -> (N, C, H*W): contiguous reshape (no transpose), keep native dtype (bf16 OK).
        logits = input.reshape(N, C, HW)

        depth = target.reshape(N, HW).astype(jnp.float32)
        if mask is not None:
            mvalid = jnp.broadcast_to(mask, target.shape).reshape(N, HW) > 0
            # Fold the mask into the depth: masked pixels become depth 0 -> quantize to -inf
            # -> ignored by the kernel (same loss as target=ignore_index in PyTorch).
            depth = jnp.where(mvalid, depth, 0.0)
        depth = depth.reshape(N, 1, HW)
        # NOTE: PyTorch also overwrites masked logits with ignore_index; that does not change the
        # loss value (those pixels are ignored), so it is skipped here.

        # Pad the pixel axis to a lane multiple only (rare; avoids full-array pad copies for
        # typical image sizes — overhang tiles are handled in-kernel instead).
        HWp = _round_up(HW, 128)
        if HWp != HW:
            logits = jnp.pad(logits, ((0, 0), (0, 0), (0, HWp - HW)))
            depth = jnp.pad(depth, ((0, 0), (0, 0), (0, HWp - HW)))

        # ---- generation-aware tile / VMEM budgets ---------------------------------------
        vmem_cap = _vmem_capacity_bytes()               # ~64 MiB on v7x, ~128 MiB on v5e/v6e
        big_vmem = vmem_cap >= (100 << 20)
        lg_budget = (16 << 20) if big_vmem else (8 << 20)    # bytes for the 2 logits buffers
        itemsize = jnp.dtype(logits.dtype).itemsize
        tile_cap = int(tile_hw) if tile_hw is not None else 32768
        tile = min(tile_cap, HWp, max(128, lg_budget // (2 * C * itemsize)))
        tile = max(128, (tile // 128) * 128)
        vmem_limit = min(max(vmem_cap - (16 << 20), 32 << 20), 96 << 20)

        num_tiles = _cdiv(HWp, tile)
        # Split the pixel tiles across a leading "parallel" axis so both v7x TensorCores have
        # work even at N=1 (no cost on single-core v5e/v6e).
        splits = 2 if num_tiles >= 2 else 1
        tiles_per_split = _cdiv(num_tiles, splits)

        part = _ce_loss_pallas(
            logits, depth,
            alpha=self.alpha,
            inv_log_beta=1.0 / math.log(self.beta / self.alpha),
            bins=self.depth_bins,
            hw=HW,
            tile=tile,
            splits=splits,
            tiles_per_split=tiles_per_split,
            num_tiles=num_tiles,
            vmem_limit_bytes=vmem_limit,
        )
        # TODO(synk): nn.CrossEntropyLoss raises on out-of-range (non-ignored) target bins; a
        # kernel cannot raise, so such pixels are ignored instead (changes the mean if they occur).
        # NOTE: if zero pixels are valid the division is 0/0 -> NaN (matches PyTorch all-ignored).
        loss = jnp.sum(part[:, :, 0, :]) / jnp.sum(part[:, :, 1, :])

        if not return_interpolated:
            return loss
        return loss, intr_input


def _reference_loss(input, target, min_depth=0.001, max_depth=10, depth_bins=64):
    """Pure-JAX reference (no mask, all depths valid & in range)."""
    beta = max_depth + (1 - min_depth)
    tq = jnp.round(jnp.log(target) * ((depth_bins - 1) / math.log(beta))).astype(jnp.int32)
    logp = jax.nn.log_softmax(input.astype(jnp.float32), axis=1)
    picked = jnp.take_along_axis(logp, tq[:, None, :, :], axis=1)[:, 0]
    return -jnp.mean(picked)


def _reference_loss_masked(input, target, mask, min_depth=0.001, max_depth=10, depth_bins=64):
    """Pure-JAX reference with a mask; masked pixels are ignored (mean over valid pixels)."""
    beta = max_depth + (1 - min_depth)
    tq_f = jnp.log(jnp.maximum(target, 1e-30)) * ((depth_bins - 1) / math.log(beta))
    tq = jnp.clip(jnp.round(tq_f), 0, depth_bins - 1).astype(jnp.int32)
    logp = jax.nn.log_softmax(input.astype(jnp.float32), axis=1)
    picked = jnp.take_along_axis(logp, tq[:, None, :, :], axis=1)[:, 0]     # (N,H,W)
    valid = mask > 0
    return -jnp.sum(jnp.where(valid, picked, 0.0)) / jnp.sum(valid)


if __name__ == "__main__":
    key = jax.random.PRNGKey(0)
    k1, k2, k3, k4, k5 = jax.random.split(key, 5)

    # --- 1) unmasked f32 path vs pure-JAX reference --------------------------------------
    N, C, H, W = 2, 64, 16, 16              # C == depth_bins
    logits = jax.random.normal(k1, (N, C, H, W), dtype=jnp.float32)
    # depths in [1, 10] so quantized bins fall inside [0, depth_bins-1] (as PyTorch CE requires)
    depth = jax.random.uniform(k2, (N, H, W), minval=1.0, maxval=10.0, dtype=jnp.float32)

    loss_fn = DiscreteNLLLoss(min_depth=0.001, max_depth=10, depth_bins=C)

    loss = jax.block_until_ready(loss_fn({"metric_depth": logits}, depth))
    ref = jax.block_until_ready(_reference_loss(logits, depth, depth_bins=C))
    assert jnp.allclose(loss, ref, rtol=1e-4, atol=1e-4), (loss, ref)

    # --- 2) masked path: masked pixels carry invalid (zero) depth and must not poison the mean
    mask = (jax.random.uniform(k3, (N, H, W)) > 0.5).astype(jnp.float32)
    depth_bad = depth * mask                # masked pixels -> depth 0 (log -> -inf)
    loss_m = jax.block_until_ready(loss_fn({"metric_depth": logits}, depth_bad, mask=mask))
    ref_m = jax.block_until_ready(_reference_loss_masked(logits, depth_bad, mask, depth_bins=C))
    assert bool(jnp.isfinite(loss_m)), loss_m
    assert jnp.allclose(loss_m, ref_m, rtol=1e-4, atol=1e-4), (loss_m, ref_m)

    # --- 3) bf16 logits, N=1, pixel count not a multiple of the forced tile: exercises the
    #        two-way tile split, the clamped overhang tile and the tail-lane gate.
    N2, H2, W2 = 1, 20, 32
    logits_bf = jax.random.normal(k4, (N2, C, H2, W2), dtype=jnp.bfloat16)
    depth2 = jax.random.uniform(k5, (N2, H2, W2), minval=1.0, maxval=10.0, dtype=jnp.float32)
    loss_b = jax.block_until_ready(loss_fn({"metric_depth": logits_bf}, depth2, tile_hw=256))
    ref_b = jax.block_until_ready(_reference_loss(logits_bf, depth2, depth_bins=C))
    assert jnp.allclose(loss_b, ref_b, rtol=2e-3, atol=2e-3), (loss_b, ref_b)

    print("KERNEL_OK")
</pallas_src>

<mosaic_0001>
module attributes {stable_mosaic.version = 11 : i64} {
  func.func @_ce_kernel(%arg0: i32, %arg1: i32, %arg2: i32, %arg3: memref<1x64x256xf32, #tpu.memory_space<vmem>>, %arg4: memref<1x1x256xf32, #tpu.memory_space<vmem>>, %arg5: memref<1x1x2x256xf32, #tpu.memory_space<vmem>>) attributes {dimension_semantics = [#tpu.dimension_semantics<parallel>, #tpu.dimension_semantics<parallel>, #tpu.dimension_semantics<arbitrary>], iteration_bounds = array<i64: 1, 2, 1>, scalar_prefetch = 0 : i64, scratch_operands = 0 : i64, tpu.core_type = #tpu.core_type<tc>, window_params = [{transform_indices = @transform_0, window_bounds = array<i64: 1, 64, 256>}, {transform_indices = @transform_1, window_bounds = array<i64: 1, 1, 256>}, {transform_indices = @transform_2, window_bounds = array<i64: 1, 1, 2, 256>}]} {
    %c0_i32 = arith.constant 0 : i32
    %0 = arith.cmpi eq, %arg2, %c0_i32 : i32
    %1 = arith.extui %0 : i1 to i32
    %c0_i32_0 = arith.constant 0 : i32
    %2 = arith.cmpi ne, %1, %c0_i32_0 : i32
    scf.if %2 {
      %cst = arith.constant 0.000000e+00 : f32
      %8 = vector.broadcast %cst : f32 to vector<1x1x2x256xf32>
      %c0 = arith.constant 0 : index
      %c0_3 = arith.constant 0 : index
      %c0_4 = arith.constant 0 : index
      %c0_5 = arith.constant 0 : index
      %9 = vector.load %arg5[%c0, %c0_3, %c0_4, %c0_5] : memref<1x1x2x256xf32, #tpu.memory_space<vmem>>, vector<1x1x2x256xf32>
      tpu.vector_store %arg5[%c0, %c0_3, %c0_4, %c0_5], %8 {strides = array<i32>} : memref<1x1x2x256xf32, #tpu.memory_space<vmem>>, vector<1x1x2x256xf32>,
    } else {
    }
    %c1_i32 = arith.constant 1 : i32
    %3 = arith.muli %arg0, %c1_i32 : i32
    %4 = arith.addi %3, %arg2 : i32
    %c1_i32_1 = arith.constant 1 : i32
    %5 = arith.cmpi slt, %4, %c1_i32_1 : i32
    %6 = arith.extui %5 : i1 to i32
    %c0_i32_2 = arith.constant 0 : i32
    %7 = arith.cmpi ne, %6, %c0_i32_2 : i32
    scf.if %7 {
      %c0 = arith.constant 0 : index
      %c0_3 = arith.constant 0 : index
      %c0_4 = arith.constant 0 : index
      %8 = vector.load %arg3[%c0, %c0_3, %c0_4] : memref<1x64x256xf32, #tpu.memory_space<vmem>>, vector<1x64x256xf32>
      %9 = vector.shape_cast %8 : vector<1x64x256xf32> to vector<64x256xf32>
      %c0_5 = arith.constant 0 : index
      %c0_6 = arith.constant 0 : index
      %c0_7 = arith.constant 0 : index
      %10 = vector.load %arg4[%c0_5, %c0_6, %c0_7] : memref<1x1x256xf32, #tpu.memory_space<vmem>>, vector<1x1x256xf32>
      %11 = vector.shape_cast %10 : vector<1x1x256xf32> to vector<1x256xf32>
      %cst = arith.constant 1.000000e+00 : f32
      %12 = vector.broadcast %cst : f32 to vector<1x256xf32>
      %13 = arith.mulf %11, %12 : vector<1x256xf32>
      %14 = math.log %13 : vector<1x256xf32>
      %cst_8 = arith.constant 26.2740364 : f32
      %15 = vector.broadcast %cst_8 : f32 to vector<1x256xf32>
      %16 = arith.mulf %14, %15 : vector<1x256xf32>
      %17 = math.roundeven %16 : vector<1x256xf32>
      %cst_9 = arith.constant 0.000000e+00 : f32
      %18 = vector.broadcast %cst_9 : f32 to vector<1x256xf32>
      %19 = arith.cmpf oge, %17, %18 : vector<1x256xf32>
      %cst_10 = arith.constant 6.300000e+01 : f32
      %20 = vector.broadcast %cst_10 : f32 to vector<1x256xf32>
      %21 = arith.cmpf ole, %17, %20 : vector<1x256xf32>
      %22 = arith.andi %19, %21 : vector<1x256xi1>
      %cst_11 = arith.constant 0.000000e+00 : f32
      %23 = vector.broadcast %cst_11 : f32 to vector<1x256xf32>
      %24 = arith.select %22, %17, %23 : vector<1x256xi1>, vector<1x256xf32>
      %25 = arith.fptosi %24 : vector<1x256xf32> to vector<1x256xi32>
      %cst_12 = arith.constant dense<0xFF800000> : vector<256xf32>
      %26 = vector.multi_reduction <maximumf>, %9, %cst_12 [0] : vector<64x256xf32> to vector<256xf32>
      %27 = vector.shape_cast %26 : vector<256xf32> to vector<1x256xf32>
      %28 = vector.broadcast %27 : vector<1x256xf32> to vector<64x256xf32>
      %29 = arith.subf %9, %28 : vector<64x256xf32>
      %30 = math.exp %29 : vector<64x256xf32>
      %cst_13 = arith.constant dense<0.000000e+00> : vector<256xf32>
      %31 = vector.multi_reduction <add>, %30, %cst_13 [0] : vector<64x256xf32> to vector<256xf32>
      %32 = vector.shape_cast %31 : vector<256xf32> to vector<1x256xf32>
      %33 = tpu.iota {dimensions = array<i32: 0>} : vector<64x256xi32>
      %34 = vector.broadcast %25 : vector<1x256xi32> to vector<64x256xi32>
      %35 = arith.cmpi eq, %33, %34 : vector<64x256xi32>
      %cst_14 = arith.constant 0.000000e+00 : f32
      %36 = vector.broadcast %cst_14 : f32 to vector<64x256xf32>
      %37 = arith.select %35, %9, %36 : vector<64x256xi1>, vector<64x256xf32>
      %cst_15 = arith.constant dense<0.000000e+00> : vector<256xf32>
      %38 = vector.multi_reduction <add>, %37, %cst_15 [0] : vector<64x256xf32> to vector<256xf32>
      %39 = vector.shape_cast %38 : vector<256xf32> to vector<1x256xf32>
      %40 = math.log %32 : vector<1x256xf32>
      %41 = arith.subf %39, %27 : vector<1x256xf32>
      %42 = arith.subf %40, %41 : vector<1x256xf32>
      %cst_16 = arith.constant 0.000000e+00 : f32
      %43 = vector.broadcast %cst_16 : f32 to vector<1x256xf32>
      %44 = arith.select %22, %42, %43 : vector<1x256xi1>, vector<1x256xf32>
      %c0_17 = arith.constant 0 : index
      %c0_18 = arith.constant 0 : index
      %c0_19 = arith.constant 0 : index
      %c0_20 = arith.constant 0 : index
      %45 = vector.load %arg5[%c0_17, %c0_18, %c0_19, %c0_20] : memref<1x1x2x256xf32, #tpu.memory_space<vmem>>, vector<1x1x1x256xf32>
      %46 = vector.shape_cast %45 : vector<1x1x1x256xf32> to vector<1x256xf32>
      %47 = arith.addf %46, %44 : vector<1x256xf32>
      %c0_21 = arith.constant 0 : index
      %c0_22 = arith.constant 0 : index
      %c0_23 = arith.constant 0 : index
      %c0_24 = arith.constant 0 : index
      %48 = vector.load %arg5[%c0_21, %c0_22, %c0_23, %c0_24] : memref<1x1x2x256xf32, #tpu.memory_space<vmem>>, vector<1x1x1x256xf32>
      %49 = vector.shape_cast %48 : vector<1x1x1x256xf32> to vector<1x256xf32>
      %50 = vector.shape_cast %47 : vector<1x256xf32> to vector<1x1x1x256xf32>
      tpu.vector_store %arg5[%c0_21, %c0_22, %c0_23, %c0_24], %50 {strides = array<i32>} : memref<1x1x2x256xf32, #tpu.memory_space<vmem>>, vector<1x1x1x256xf32>,
      %c0_25 = arith.constant 0 : index
      %c0_26 = arith.constant 0 : index
      %c1 = arith.constant 1 : index
      %c0_27 = arith.constant 0 : index
      %51 = vector.load %arg5[%c0_25, %c0_26, %c1, %c0_27] : memref<1x1x2x256xf32, #tpu.memory_space<vmem>>, vector<1x1x1x256xf32>
      %52 = vector.shape_cast %51 : vector<1x1x1x256xf32> to vector<1x256xf32>
      %53 = arith.extui %22 : vector<1x256xi1> to vector<1x256xi32>
      %54 = arith.sitofp %53 : vector<1x256xi32> to vector<1x256xf32>
      %55 = arith.addf %52, %54 : vector<1x256xf32>
      %c0_28 = arith.constant 0 : index
      %c0_29 = arith.constant 0 : index
      %c1_30 = arith.constant 1 : index
      %c0_31 = arith.constant 0 : index
      %56 = vector.load %arg5[%c0_28, %c0_29, %c1_30, %c0_31] : memref<1x1x2x256xf32, #tpu.memory_space<vmem>>, vector<1x1x1x256xf32>
      %57 = vector.shape_cast %56 : vector<1x1x1x256xf32> to vector<1x256xf32>
      %58 = vector.shape_cast %55 : vector<1x256xf32> to vector<1x1x1x256xf32>
      tpu.vector_store %arg5[%c0_28, %c0_29, %c1_30, %c0_31], %58 {strides = array<i32>} : memref<1x1x2x256xf32, #tpu.memory_space<vmem>>, vector<1x1x1x256xf32>,
    } else {
    }
    return
  }
  func.func @transform_0(%arg0: i32, %arg1: i32, %arg2: i32) -> (i32, i32, i32) {
    %c1_i32 = arith.constant 1 : i32
    %0 = arith.muli %arg0, %c1_i32 : i32
    %1 = arith.addi %0, %arg2 : i32
    %c0_i32 = arith.constant 0 : i32
    %2 = arith.minsi %1, %c0_i32 : i32
    %c0_i32_0 = arith.constant 0 : i32
    %c0_i32_1 = arith.constant 0 : i32
    return %arg1, %c0_i32_0, %2 : i32, i32, i32
  }
  func.func @transform_1(%arg0: i32, %arg1: i32, %arg2: i32) -> (i32, i32, i32) {
    %c1_i32 = arith.constant 1 : i32
    %0 = arith.muli %arg0, %c1_i32 : i32
    %1 = arith.addi %0, %arg2 : i32
    %c0_i32 = arith.constant 0 : i32
    %2 = arith.minsi %1, %c0_i32 : i32
    %c0_i32_0 = arith.constant 0 : i32
    %c0_i32_1 = arith.constant 0 : i32
    return %arg1, %c0_i32_0, %2 : i32, i32, i32
  }
  func.func @transform_2(%arg0: i32, %arg1: i32, %arg2: i32) -> (i32, i32, i32, i32) {
    %c0_i32 = arith.constant 0 : i32
    %c0_i32_0 = arith.constant 0 : i32
    %c0_i32_1 = arith.constant 0 : i32
    return %arg1, %arg0, %c0_i32, %c0_i32_0 : i32, i32, i32, i32
  }
}

</mosaic_0001>

<llo_original>
// kernel: tpu_custom_call.1
$region0: #{tpu_custom_call.1}
  #allocation0 [shape = 'u32[]', space=smem, size = 0x4, offset = 0x4, fixed_abs, tag = 'smem constant byte address 0x4 - core index']
  #allocation1 [shape = 'u32[72,128]{1,0:T(1,128)}', space=vmem, size = 0x9000, scoped, tag = 'internal scratch']
  %s0 = inlined_call_operand.hbm [shape: f32[2,64,256], index: 0, kind: input, shape index: {}]
  %s1 = inlined_call_operand.hbm [shape: f32[2,1,256], index: 1, kind: input, shape index: {}]
  %s2 = inlined_call_operand.hbm [shape: f32[2,1,2,256], index: 2, kind: output, shape index: {}]
  %s3 = sld [smem:[#allocation0]]
  $region57: #{tpu_custom_call.1} parent=0
    _
  %s5 = ssub.s32 1, %s3
  %s6 = scalar_select 0, %s5, %s3
  $region1: #{tpu_custom_call.1} parent=0
    #allocation2 [shape = 'u8[131072]{0}', space=vmem, size = 0x20000, scoped, tag = 'input window, operand 0']
    #allocation3 [shape = 's32[2]{0}', space=sflag, size = 0x8, scoped, tag = 'scoped memory for tpu_custom_call.1']
    #allocation4 [shape = 's32[2]{0}', space=sflag, size = 0x8, scoped, tag = 'scoped memory for tpu_custom_call.1']
    #allocation5 [shape = 'u8[2048]{0}', space=vmem, size = 0x800, scoped, tag = 'input window, operand 1']
    #allocation6 [shape = 's32[2]{0}', space=sflag, size = 0x8, scoped, tag = 'scoped memory for tpu_custom_call.1']
    #allocation7 [shape = 'u8[4096]{0}', space=vmem, size = 0x1000, scoped, tag = 'output window, operand 0']
    %7 = vsyncpa [#allocation3], 0
    %s8 = scalar_lea.sflag [#allocation3], 1
    %9 = vsyncpa %s8, 0
    %10 = vsyncpa [#allocation6], 0
    %s11 = scalar_lea.sflag [#allocation6], 1
    %12 = vsyncpa %s11, 0
    %13 = vsyncpa [#allocation4], 0
    %s14 = scalar_lea.sflag [#allocation4], 1
    %15 = vsyncpa %s14, 0
    loop: start=0, step=1, limit=4
    $region2: #{tpu_custom_call.1} parent=1 // loop_pre_header
      _
    $region3: #{tpu_custom_call.1} parent=1 // loop_header
      %s17 = sphi 0, %s21
      %p18 = scmp.ge.s32.totalorder %s17, 4
      %s24 = sphi 0, %s43
      %s25 = sphi 0, %s39
      %s26 = sphi 0, %s35
      %s27 = sphi 0, %s24
      %s28 = sphi 0, %s25
      %s29 = sphi 0, %s26
      %s30 = sphi 0, %s27
      %s31 = sphi 0, %s28
      %s32 = sphi 0, %s29
      %s54 = sphi 0, %s56
      %s57 = sphi 0, %s54
      %s58 = sphi 0, %s57
      %s74 = sphi 0, %s58
      %s88 = sphi 0, %s90
      %s91 = sphi 0, %s88
      %s92 = sphi 0, %s91
      %s108 = sphi 0, %s92
      %s116 = sphi 0, %s118
      %s119 = sphi 0, %s116
      %s120 = sphi 0, %s119
      %s136 = sphi 0, %s120
    $region4: #{tpu_custom_call.1} parent=1 // loop_header_branch
      %20 = sbr.rel (%p18) target = $region8
    $region5: #{tpu_custom_call.1} parent=1 // loop_body
      %s22 = ssub.s32 %s17, 1
      %s23 = ssub.s32 %s17, 2
      %s33 = sadd.s32 1, %s26
      %p34 = scmp.ge.s32.totalorder %s33, 1
      %s35 = scalar_select %p34, 0, %s33
      %s36 = sadd.s32 1, %s25
      %s37 = scalar_select %p34, %s36, %s25
      %p38 = scmp.ge.s32.totalorder %s37, 2
      %s39 = scalar_select %p38, 0, %s37
      %s40 = sadd.s32 1, %s24
      %s41 = scalar_select %p38, %s40, %s24
      %p42 = scmp.ge.s32.totalorder %s41, 1
      %s43 = scalar_select %p42, 0, %s41
      %s44 = sadd.s32 %s24, %s26
      %p45 = scmp.lt.s32.totalorder %s44, 0
      %s46 = scalar_select %p45, %s44, 0
      %s47 = sadd.s32 %s43, %s35
      %p48 = scmp.lt.s32.totalorder %s47, 0
      %s49 = scalar_select %p48, %s47, 0
      %s50 = ssub.s32 %s25, %s39
      %s51 = ssub.s32 %s46, %s49
      %s52 = sor.u32 %s50, %s51
      %p53 = scmp.eq.s32.totalorder %s52, 0
      %s55 = sadd.s32 %s54, 1
      %s56 = scalar_select %p53, %s54, %s55
      %p59 = pneg %p53
      %p60 = scmp.eq.s32.totalorder %s17, 1
      %p61 = por %p59, %p60
      %p62 = scmp.ne.s32.totalorder %s54, %s57
      %p63 = scmp.eq.s32.totalorder %s17, 0
      %p64 = por %p62, %p63
      %p65 = scmp.ne.s32.totalorder %s54, %s57
      %p66 = scmp.eq.s32.totalorder %s22, 1
      %p67 = por %p65, %p66
      %p68 = scmp.ne.s32.totalorder %s57, %s58
      %p69 = scmp.eq.s32.totalorder %s22, 0
      %p70 = por %p68, %p69
      %p71 = scmp.ne.s32.totalorder %s57, %s58
      %p72 = scmp.eq.s32.totalorder %s23, 1
      %p73 = por %p71, %p72
      %p75 = scmp.ne.s32.totalorder %s58, %s74
      %p76 = scmp.eq.s32.totalorder %s23, 0
      %p77 = por %p75, %p76
      %s78 = sadd.s32 %s24, %s26
      %p79 = scmp.lt.s32.totalorder %s78, 0
      %s80 = scalar_select %p79, %s78, 0
      %s81 = sadd.s32 %s43, %s35
      %p82 = scmp.lt.s32.totalorder %s81, 0
      %s83 = scalar_select %p82, %s81, 0
      %s84 = ssub.s32 %s25, %s39
      %s85 = ssub.s32 %s80, %s83
      %s86 = sor.u32 %s84, %s85
      %p87 = scmp.eq.s32.totalorder %s86, 0
      %s89 = sadd.s32 %s88, 1
      %s90 = scalar_select %p87, %s88, %s89
      %p93 = pneg %p87
      %p94 = scmp.eq.s32.totalorder %s17, 1
      %p95 = por %p93, %p94
      %p96 = scmp.ne.s32.totalorder %s88, %s91
      %p97 = scmp.eq.s32.totalorder %s17, 0
      %p98 = por %p96, %p97
      %p99 = scmp.ne.s32.totalorder %s88, %s91
      %p100 = scmp.eq.s32.totalorder %s22, 1
      %p101 = por %p99, %p100
      %p102 = scmp.ne.s32.totalorder %s91, %s92
      %p103 = scmp.eq.s32.totalorder %s22, 0
      %p104 = por %p102, %p103
      %p105 = scmp.ne.s32.totalorder %s91, %s92
      %p106 = scmp.eq.s32.totalorder %s23, 1
      %p107 = por %p105, %p106
      %p109 = scmp.ne.s32.totalorder %s92, %s108
      %p110 = scmp.eq.s32.totalorder %s23, 0
      %p111 = por %p109, %p110
      %s112 = ssub.s32 %s25, %s39
      %s113 = ssub.s32 %s24, %s43
      %s114 = sor.u32 %s112, %s113
      %p115 = scmp.eq.s32.totalorder %s114, 0
      %s117 = sadd.s32 %s116, 1
      %s118 = scalar_select %p115, %s116, %s117
      %p121 = pneg %p115
      %p122 = scmp.eq.s32.totalorder %s17, 1
      %p123 = por %p121, %p122
      %p124 = scmp.ne.s32.totalorder %s116, %s119
      %p125 = scmp.eq.s32.totalorder %s17, 0
      %p126 = por %p124, %p125
      %p127 = scmp.ne.s32.totalorder %s116, %s119
      %p128 = scmp.eq.s32.totalorder %s22, 1
      %p129 = por %p127, %p128
      %p130 = scmp.ne.s32.totalorder %s119, %s120
      %p131 = scmp.eq.s32.totalorder %s22, 0
      %p132 = por %p130, %p131
      %p133 = scmp.ne.s32.totalorder %s119, %s120
      %p134 = scmp.eq.s32.totalorder %s23, 1
      %p135 = por %p133, %p134
      %p137 = scmp.ne.s32.totalorder %s120, %s136
      %p138 = scmp.eq.s32.totalorder %s23, 0
      %p139 = por %p137, %p138
      %p140 = scmp.le.s32.totalorder 1, %s17
      %p141 = scmp.lt.s32.totalorder %s17, 3
      %p142 = pnand %p140, %p141
      %p143 = pneg %p142
      // Predicated region
      $region9: #{tpu_custom_call.1} parent=5 // pred_check
        _
      $region10: #{tpu_custom_call.1} parent=5 // pred_check_branch
        %145 = sbr.rel (%p142) target = $region12
      $region11: #{tpu_custom_call.1} parent=5 // pred_region
        %s146 = ssub.s32 %s17, 1
      $region12: #{tpu_custom_call.1} parent=5 // pred_fallthru
        _
      %p147 = scmp.lt.s32.totalorder %s17, 2
      // Predicated region
      $region13: #{tpu_custom_call.1} parent=5 // pred_check
        %p148 = pneg %p147
      $region14: #{tpu_custom_call.1} parent=5 // pred_check_branch
        %150 = sbr.rel (%p148) target = $region16
      $region15: #{tpu_custom_call.1} parent=5 // pred_region
        // Predicated region
        $region17: #{tpu_custom_call.1} parent=15 // pred_check
          %p151 = pneg %p64
        $region18: #{tpu_custom_call.1} parent=15 // pred_check_branch
          %153 = sbr.rel (%p151) target = $region20
        $region19: #{tpu_custom_call.1} parent=15 // pred_region
          %s154 = sand.u32 %s54, 1
          %s155 = scalar_lea.sflag [#allocation3], %s154
          %s156 = sand.u32 %s54, 1
          %s157 = smul.addr %s156, 128
          %s158 = scalar_lea.vmem [#allocation2], %s157
          %s159 = sadd.s32 %s24, %s26
          %p160 = scmp.lt.s32.totalorder %s159, 0
          %s161 = scalar_select %p160, %s159, 0
          %s162 = smul.u32 2, %s161
          %164 = vsyncadd %s155, 0
          %s165 = smul.addr %s25, 16
          %s166 = sadd.s32 %s162, %s165
          %s167 = smul.addr %s166, 8
          %s168 = scalar_lea.hbm %s0, %s167
          %s169 = sshll.u32 %s168, 4
          %s170 = int_to_ptr.hbm [resolvable:$true] %s169
          %s171 = sshll.u32 %s158, 4
          %s172 = int_to_ptr.vmem [resolvable:$true] %s171
          %177 = dma.hbm_to_vmem [thread:$0]  %s170, 2048, %s172, %s155, 256, 256, 16
        $region20: #{tpu_custom_call.1} parent=15 // pred_fallthru
          _
        // Predicated region
        $region21: #{tpu_custom_call.1} parent=15 // pred_check
          %p178 = pneg %p98
        $region22: #{tpu_custom_call.1} parent=15 // pred_check_branch
          %180 = sbr.rel (%p178) target = $region24
        $region23: #{tpu_custom_call.1} parent=15 // pred_region
          %s181 = sand.u32 %s88, 1
          %s182 = scalar_lea.sflag [#allocation6], %s181
          %s183 = sand.u32 %s88, 1
          %s184 = smul.addr %s183, 2
          %s185 = scalar_lea.vmem [#allocation5], %s184
          %s186 = sadd.s32 %s24, %s26
          %p187 = scmp.lt.s32.totalorder %s186, 0
          %s188 = scalar_select %p187, %s186, 0
          %s189 = smul.u32 2, %s188
          %191 = vsyncadd %s182, 0
          %s192 = smul.addr %s25, 2
          %s193 = sadd.s32 %s189, %s192
          %s194 = scalar_lea.hbm %s1, %s193
          %s196 = sshll.u32 %s194, 4
          %s197 = int_to_ptr.hbm [resolvable:$true] %s196
          %s198 = sshll.u32 %s185, 4
          %s199 = int_to_ptr.vmem [resolvable:$true] %s198
          %201 = dma.hbm_to_vmem [thread:$0]  %s197, 32, %s199, %s182
        $region24: #{tpu_custom_call.1} parent=15 // pred_fallthru
          _
      $region16: #{tpu_custom_call.1} parent=5 // pred_fallthru
        _
      %p202 = scmp.le.s32.totalorder 1, %s17
      %p203 = scmp.lt.s32.totalorder %s17, 3
      %p204 = pnand %p202, %p203
      %p205 = pneg %p204
      // Predicated region
      $region25: #{tpu_custom_call.1} parent=5 // pred_check
        _
      $region26: #{tpu_custom_call.1} parent=5 // pred_check_branch
        %207 = sbr.rel (%p204) target = $region28
      $region27: #{tpu_custom_call.1} parent=5 // pred_region
        %s208 = ssub.s32 %s17, 1
        %s209 = sand.u32 %s57, 1
        %s210 = scalar_lea.sflag [#allocation3], %s209
        %s211 = sand.u32 %s57, 1
        %s212 = smul.addr %s211, 128
        %s213 = scalar_lea.vmem [#allocation2], %s212
        // Predicated region
        $region29: #{tpu_custom_call.1} parent=27 // pred_check
          %p214 = pneg %p70
        $region30: #{tpu_custom_call.1} parent=27 // pred_check_branch
          %216 = sbr.rel (%p214) target = $region32
        $region31: #{tpu_custom_call.1} parent=27 // pred_region
          %218 = dma.done %s210, 2048
        $region32: #{tpu_custom_call.1} parent=27 // pred_fallthru
          _
        %s219 = sand.u32 %s91, 1
        %s220 = scalar_lea.sflag [#allocation6], %s219
        %s221 = sand.u32 %s91, 1
        %s222 = smul.addr %s221, 2
        %s223 = scalar_lea.vmem [#allocation5], %s222
        // Predicated region
        $region33: #{tpu_custom_call.1} parent=27 // pred_check
          %p224 = pneg %p104
        $region34: #{tpu_custom_call.1} parent=27 // pred_check_branch
          %226 = sbr.rel (%p224) target = $region36
        $region35: #{tpu_custom_call.1} parent=27 // pred_region
          %228 = dma.done %s220, 32
        $region36: #{tpu_custom_call.1} parent=27 // pred_fallthru
          _
        %s229 = sand.u32 %s57, 1
        %s230 = scalar_lea.sflag [#allocation3], %s229
        %s231 = sand.u32 %s57, 1
        %s232 = smul.addr %s231, 128
        %s233 = scalar_lea.vmem [#allocation2], %s232
        %p234 = pneg %p70
        %p235 = pneg %p67
        %s236 = sand.u32 %s91, 1
        %s237 = scalar_lea.sflag [#allocation6], %s236
        %s238 = sand.u32 %s91, 1
        %s239 = smul.addr %s238, 2
        %s240 = scalar_lea.vmem [#allocation5], %s239
        %p241 = pneg %p104
        %p242 = pneg %p101
        %p243 = pneg %p132
        %p244 = pneg %p129
        %s245 = sand.u32 %s119, 1
        %s246 = scalar_lea.sflag [#allocation4], %s245
        %s247 = sand.u32 %s119, 1
        %s248 = smul.addr %s247, 4
        %s249 = scalar_lea.vmem [#allocation7], %s248
        %s250 = sadd.s32 %s27, %s29
        %p251 = scmp.lt.s32.totalorder %s250, 0
        %s252 = scalar_select %p251, %s250, 0
        %s253 = smul.u32 2, %s252
        %s254 = sadd.s32 %s27, %s29
        %p255 = scmp.lt.s32.totalorder %s254, 0
        %s256 = scalar_select %p255, %s254, 0
        %s257 = smul.u32 2, %s256
        %p258 = scmp.eq.s32.totalorder %s29, 0
        // Predicated region
        $region37: #{tpu_custom_call.1} parent=27 // pred_check
          %p259 = pneg %p258
        $region38: #{tpu_custom_call.1} parent=27 // pred_check_branch
          %261 = sbr.rel (%p259) target = $region40
        $region39: #{tpu_custom_call.1} parent=27 // pred_region
          %262 = vst [vmem:[%s249] sm:$0xf] 0.0
        $region40: #{tpu_custom_call.1} parent=27 // pred_fallthru
          _
        %s263 = sadd.s32 %s27, %s29
        %p264 = scmp.lt.s32.totalorder %s263, 1
        // Predicated region
        $region41: #{tpu_custom_call.1} parent=27 // pred_check
          %p265 = pneg %p264
        $region42: #{tpu_custom_call.1} parent=27 // pred_check_branch
          %267 = sbr.rel (%p265) target = $region44
        $region43: #{tpu_custom_call.1} parent=27 // pred_region
          %v268 = vld [vmem:[%s213] sm:$0xff]
          %v269 = vld [vmem:[%s213 + $0x8] sm:$0xff]
          %v270 = vld [vmem:[%s213 + $0x10] sm:$0xff]
          %v271 = vld [vmem:[%s213 + $0x18] sm:$0xff]
          %v272 = vld [vmem:[%s213 + $0x20] sm:$0xff]
          %v273 = vld [vmem:[%s213 + $0x28] sm:$0xff]
          %v274 = vld [vmem:[%s213 + $0x30] sm:$0xff]
          %v275 = vld [vmem:[%s213 + $0x38] sm:$0xff]
          %v276 = vld [vmem:[%s213 + $0x40] sm:$0xff]
          %v277 = vld [vmem:[%s213 + $0x48] sm:$0xff]
          %v278 = vld [vmem:[%s213 + $0x50] sm:$0xff]
          %v279 = vld [vmem:[%s213 + $0x58] sm:$0xff]
          %v280 = vld [vmem:[%s213 + $0x60] sm:$0xff]
          %v281 = vld [vmem:[%s213 + $0x68] sm:$0xff]
          %v282 = vld [vmem:[%s213 + $0x70] sm:$0xff]
          %v283 = vld [vmem:[%s213 + $0x78] sm:$0xff]
          %v284 = vld [vmem:[%s223] sm:$0x3]
          %v285 = vlog2.pop %v284
          %v286 = vmul.f32 %v285, 0.6931472
          %v287 = vmul.f32 %v286, 26.274036
          %v288 = vround.ne.pseudo %v287
          %vm289 = vcmp.ge.f32.partialorder %v288, 0.0
          %vm290 = vcmp.le.f32.partialorder %v288, 63.0
          %vm291 = vmand %vm289, %vm290
          %v292 = vsel %vm291, %v288, 0.0
          %v293 = vcvt.f32.s32.to.zero.pseudo %v292
          %v294 = vmax.f32 %v268, %v272
          %v295 = vmax.f32 %v270, %v274
          %v296 = vmax.f32 %v294, %v276
          %v297 = vmax.f32 %v295, %v278
          %v298 = vmax.f32 %v296, %v280
          %v299 = vmax.f32 %v297, %v282
          %v300 = vmax.f32 %v298, %v299
          %v301 = vrot.slane %v300, 4
          %v302 = vmax.f32 %v300, %v301
          %v303 = vrot.slane %v302, 2
          %v304 = vmax.f32 %v302, %v303
          %v305 = vrot.slane %v304, 1
          %v306 = vmax.f32 %v304, %v305
          %v307 = vmax.f32 %v269, %v273
          %v308 = vmax.f32 %v271, %v275
          %v309 = vmax.f32 %v307, %v277
          %v310 = vmax.f32 %v308, %v279
          %v311 = vmax.f32 %v309, %v281
          %v312 = vmax.f32 %v310, %v283
          %v313 = vmax.f32 %v311, %v312
          %v314 = vrot.slane %v313, 4
          %v315 = vmax.f32 %v313, %v314
          %v316 = vrot.slane %v315, 2
          %v317 = vmax.f32 %v315, %v316
          %v318 = vrot.slane %v317, 1
          %v319 = vmax.f32 %v317, %v318
          %v320 = vsub.f32 %v268, %v306
          %v321 = vsub.f32 %v269, %v319
          %v322 = vsub.f32 %v270, %v306
          %v323 = vsub.f32 %v271, %v319
          %v324 = vsub.f32 %v272, %v306
          %v325 = vsub.f32 %v273, %v319
          %v326 = vsub.f32 %v274, %v306
          %v327 = vsub.f32 %v275, %v319
          %v328 = vsub.f32 %v276, %v306
          %v329 = vsub.f32 %v277, %v319
          %v330 = vsub.f32 %v278, %v306
          %v331 = vsub.f32 %v279, %v319
          %v332 = vsub.f32 %v280, %v306
          %v333 = vsub.f32 %v281, %v319
          %v334 = vsub.f32 %v282, %v306
          %v335 = vsub.f32 %v283, %v319
          %v336 = vmul.f32 %v320, 1.442695
          %v337 = vpow.pop %v336
          %v338 = vmul.f32 %v321, 1.442695
          %v339 = vpow.pop %v338
          %v340 = vmul.f32 %v322, 1.442695
          %v341 = vpow.pop %v340
          %v342 = vmul.f32 %v323, 1.442695
          %v343 = vpow.pop %v342
          %v344 = vmul.f32 %v324, 1.442695
          %v345 = vpow.pop %v344
          %v346 = vmul.f32 %v325, 1.442695
          %v347 = vpow.pop %v346
          %v348 = vmul.f32 %v326, 1.442695
          %v349 = vpow.pop %v348
          %v350 = vmul.f32 %v327, 1.442695
          %v351 = vpow.pop %v350
          %v352 = vmul.f32 %v328, 1.442695
          %v353 = vpow.pop %v352
          %v354 = vmul.f32 %v329, 1.442695
          %v355 = vpow.pop %v354
          %v356 = vmul.f32 %v330, 1.442695
          %v357 = vpow.pop %v356
          %v358 = vmul.f32 %v331, 1.442695
          %v359 = vpow.pop %v358
          %v360 = vmul.f32 %v332, 1.442695
          %v361 = vpow.pop %v360
          %v362 = vmul.f32 %v333, 1.442695
          %v363 = vpow.pop %v362
          %v364 = vmul.f32 %v334, 1.442695
          %v365 = vpow.pop %v364
          %v366 = vmul.f32 %v335, 1.442695
          %v367 = vpow.pop %v366
          %v368 = vadd.f32 %v337, %v341
          %v369 = vadd.f32 %v368, %v345
          %v370 = vadd.f32 %v369, %v349
          %v371 = vadd.f32 %v370, %v353
          %v372 = vadd.f32 %v371, %v357
          %v373 = vadd.f32 %v372, %v361
          %v374 = vadd.f32 %v373, %v365
          %v375 = vrot.slane %v374, 4
          %v376 = vadd.f32 %v374, %v375
          %v377 = vrot.slane %v376, 2
          %v378 = vadd.f32 %v376, %v377
          %v379 = vrot.slane %v378, 1
          %v380 = vadd.f32 %v378, %v379
          %v381 = vadd.f32 %v339, %v343
          %v382 = vadd.f32 %v381, %v347
          %v383 = vadd.f32 %v382, %v351
          %v384 = vadd.f32 %v383, %v355
          %v385 = vadd.f32 %v384, %v359
          %v386 = vadd.f32 %v385, %v363
          %v387 = vadd.f32 %v386, %v367
          %v388 = vrot.slane %v387, 4
          %v389 = vadd.f32 %v387, %v388
          %v390 = vrot.slane %v389, 2
          %v391 = vadd.f32 %v389, %v390
          %v392 = vrot.slane %v391, 1
          %v393 = vadd.f32 %v391, %v392
          %v394 = vlaneseq
          %v395 = vshrl.u32 %v394, 7
          %v396 = vadd.s32 %v395, 8
          %v397 = vadd.s32 %v395, 16
          %v398 = vadd.s32 %v395, 24
          %v399 = vadd.s32 %v395, 32
          %v400 = vadd.s32 %v395, 40
          %v401 = vadd.s32 %v395, 48
          %v402 = vadd.s32 %v395, 56
          %v403 = vperm.slane %v293, 0
          %v404 = vperm.slane %v293, 1
          %vm405 = vcmp.eq.s32.totalorder %v395, %v403
          %vm406 = vcmp.eq.s32.totalorder %v395, %v404
          %vm407 = vcmp.eq.s32.totalorder %v396, %v403
          %vm408 = vcmp.eq.s32.totalorder %v396, %v404
          %vm409 = vcmp.eq.s32.totalorder %v397, %v403
          %vm410 = vcmp.eq.s32.totalorder %v397, %v404
          %vm411 = vcmp.eq.s32.totalorder %v398, %v403
          %vm412 = vcmp.eq.s32.totalorder %v398, %v404
          %vm413 = vcmp.eq.s32.totalorder %v399, %v403
          %vm414 = vcmp.eq.s32.totalorder %v399, %v404
          %vm415 = vcmp.eq.s32.totalorder %v400, %v403
          %vm416 = vcmp.eq.s32.totalorder %v400, %v404
          %vm417 = vcmp.eq.s32.totalorder %v401, %v403
          %vm418 = vcmp.eq.s32.totalorder %v401, %v404
          %vm419 = vcmp.eq.s32.totalorder %v402, %v403
          %vm420 = vcmp.eq.s32.totalorder %v402, %v404
          %v421 = vsel %vm405, %v268, 0.0
          %v422 = vsel %vm406, %v269, 0.0
          %v423 = vsel %vm407, %v270, 0.0
          %v424 = vsel %vm408, %v271, 0.0
          %v425 = vsel %vm409, %v272, 0.0
          %v426 = vsel %vm410, %v273, 0.0
          %v427 = vsel %vm411, %v274, 0.0
          %v428 = vsel %vm412, %v275, 0.0
          %v429 = vsel %vm413, %v276, 0.0
          %v430 = vsel %vm414, %v277, 0.0
          %v431 = vsel %vm415, %v278, 0.0
          %v432 = vsel %vm416, %v279, 0.0
          %v433 = vsel %vm417, %v280, 0.0
          %v434 = vsel %vm418, %v281, 0.0
          %v435 = vsel %vm419, %v282, 0.0
          %v436 = vsel %vm420, %v283, 0.0
          %v437 = vadd.f32 %v421, %v423
          %v438 = vadd.f32 %v437, %v425
          %v439 = vadd.f32 %v438, %v427
          %v440 = vadd.f32 %v439, %v429
          %v441 = vadd.f32 %v440, %v431
          %v442 = vadd.f32 %v441, %v433
          %v443 = vadd.f32 %v442, %v435
          %v444 = vrot.slane %v443, 4
          %v445 = vadd.f32 %v443, %v444
          %v446 = vrot.slane %v445, 2
          %v447 = vadd.f32 %v445, %v446
          %v448 = vrot.slane %v447, 1
          %v449 = vadd.f32 %v447, %v448
          %v450 = vadd.f32 %v422, %v424
          %v451 = vadd.f32 %v450, %v426
          %v452 = vadd.f32 %v451, %v428
          %v453 = vadd.f32 %v452, %v430
          %v454 = vadd.f32 %v453, %v432
          %v455 = vadd.f32 %v454, %v434
          %v456 = vadd.f32 %v455, %v436
          %v457 = vrot.slane %v456, 4
          %v458 = vadd.f32 %v456, %v457
          %v459 = vrot.slane %v458, 2
          %v460 = vadd.f32 %v458, %v459
          %v461 = vrot.slane %v460, 1
          %v462 = vadd.f32 %v460, %v461
          %v463 = vlog2.pop %v380
          %v464 = vmul.f32 %v463, 0.6931472
          %v465 = vlog2.pop %v393
          %v466 = vmul.f32 %v465, 0.6931472
          %v467 = vsub.f32 %v449, %v306
          %v468 = vsub.f32 %v462, %v319
          %v469 = vsub.f32 %v464, %v467
          %v470 = vsub.f32 %v466, %v468
          %v473 = vrot.slane %v470, 7
          %vm474 = vcmask 1040384
          %v475 = vsel %vm474, %v469, %v473
          %v477 = vsel %vm291, %v475, 0.0
          %v478 = vld [vmem:[%s249] ss:$2 sm:$0x3]
          %v479 = vadd.f32 %v478, %v477
          %v480 = vlaneseq
          %vm481 = vcmp.ge.s32.totalorder %v480, 0
          %vm482 = vcmp.lt.s32.totalorder %v480, 256
          %vm483 = vmand %vm481, %vm482
          %484 = vst.msk [vmem:[%s249] ss:$2 sm:$0x3] %vm483, %v479
          %s485 = scalar_lea.vmem %s249, 1 [#allocation7]
          %v486 = vld [vmem:[%s485] ss:$2 sm:$0x3]
          %v487 = vsel %vm291, 1, 0
          %v488 = vcvt.s32.f32 %v487
          %v489 = vadd.f32 %v486, %v488
          %490 = vst.msk [vmem:[%s485] ss:$2 sm:$0x3] %vm483, %v489
        $region44: #{tpu_custom_call.1} parent=27 // pred_fallthru
          _
        %s491 = sand.u32 %s119, 1
        %s492 = scalar_lea.sflag [#allocation4], %s491
        %s493 = sand.u32 %s119, 1
        %s494 = smul.addr %s493, 4
        %s495 = scalar_lea.vmem [#allocation7], %s494
        // Predicated region
        $region45: #{tpu_custom_call.1} parent=27 // pred_check
          %p496 = pneg %p129
        $region46: #{tpu_custom_call.1} parent=27 // pred_check_branch
          %498 = sbr.rel (%p496) target = $region48
        $region47: #{tpu_custom_call.1} parent=27 // pred_region
          %500 = vsyncadd %s492, 0
          %s501 = smul.addr %s27, 2
          %s502 = smul.addr %s28, 2
          %s503 = sadd.s32 %s501, %s502
          %s504 = smul.addr %s503, 2
          %s505 = scalar_lea.hbm %s2, %s504
          %s507 = sshll.u32 %s495, 4
          %s508 = int_to_ptr.vmem [resolvable:$true] %s507
          %s509 = sshll.u32 %s505, 4
          %s510 = int_to_ptr.hbm [resolvable:$true] %s509
          %512 = dma.vmem_to_hbm [thread:$0]  %s508, 64, %s510, %s492
        $region48: #{tpu_custom_call.1} parent=27 // pred_fallthru
          _
      $region28: #{tpu_custom_call.1} parent=5 // pred_fallthru
        _
      %p513 = scmp.le.s32.totalorder 2, %s17
      // Predicated region
      $region49: #{tpu_custom_call.1} parent=5 // pred_check
        %p514 = pneg %p513
      $region50: #{tpu_custom_call.1} parent=5 // pred_check_branch
        %516 = sbr.rel (%p514) target = $region52
      $region51: #{tpu_custom_call.1} parent=5 // pred_region
        %s517 = ssub.s32 %s17, 2
        // Predicated region
        $region53: #{tpu_custom_call.1} parent=51 // pred_check
          %p518 = pneg %p135
        $region54: #{tpu_custom_call.1} parent=51 // pred_check_branch
          %520 = sbr.rel (%p518) target = $region56
        $region55: #{tpu_custom_call.1} parent=51 // pred_region
          %s521 = sand.u32 %s120, 1
          %s522 = scalar_lea.sflag [#allocation4], %s521
          %s523 = sand.u32 %s120, 1
          %s524 = smul.addr %s523, 4
          %s525 = scalar_lea.vmem [#allocation7], %s524
          %527 = dma.done %s522, 64
        $region56: #{tpu_custom_call.1} parent=51 // pred_fallthru
          _
      $region52: #{tpu_custom_call.1} parent=5 // pred_fallthru
        _
    $region6: #{tpu_custom_call.1} parent=1 // loop_footer
      %s21 = sadd.s32 1, %s17
    $region7: #{tpu_custom_call.1} parent=1 // loop_footer_branch
      %16 = sbr.rel target = $region3
    $region8: #{tpu_custom_call.1} parent=1 // loop_exit
      _
    %528 = vsyncpa [#allocation3], 1
    %s529 = scalar_lea.sflag [#allocation3], 1
    %530 = vsyncpa %s529, 1
    %531 = vsyncpa [#allocation6], 1
    %s532 = scalar_lea.sflag [#allocation6], 1
    %533 = vsyncpa %s532, 1
    %534 = vsyncpa [#allocation4], 1
    %s535 = scalar_lea.sflag [#allocation4], 1
    %536 = vsyncpa %s535, 1

</llo_original>
